<compile_context>
chip_gen: v7x
topology: tpu7x:2x2x1
jax: 0.10.0
libtpu: 0.0.40
codegen_flags: <defaults>
</compile_context>

<pallas_src>
import functools

import jax
import jax.numpy as jnp
from jax.experimental import pallas as pl
from jax.experimental.pallas import tpu as pltpu


LANES = 512        # lane-dense last dim (multiple of 128) -> unmasked wide stores
TILE_ROWS = 1024   # 1024 x 512 x 4B = 2 MiB per f32 buffer per tile


def dropout_kernel(bits_ref, x_ref, o_ref, *, threshold, scale):
    # keep iff uniform 31-bit integer > round(p * 2^31)
    # (identical to torch's `rand > p` up to 2^-31 quantization of p).
    keep = bits_ref[...] > threshold
    x = x_ref[...]
    # Select/scale in the input dtype — no f32 round trip.
    o_ref[...] = jnp.where(
        keep, x * jnp.asarray(scale, dtype=x.dtype), jnp.zeros((), dtype=x.dtype)
    )


def dropout_pallas(x, key, p=0.1):
    """Training-mode dropout: y = x * (rand > p) / (1 - p). Any shape/dtype."""
    if p == 0.0:
        return x

    orig_shape, orig_dtype = x.shape, x.dtype
    n = x.size

    # Flatten to a lane-dense (rows, LANES) slab; pad rows so the tile divides
    # evenly (only the last-block padding is wasted, <= TILE_ROWS*LANES elems).
    rows = pl.cdiv(n, LANES)
    if rows <= TILE_ROWS:
        tile_rows = int(rows)          # single block == full array (always legal)
        rows_padded = int(rows)
    else:
        tile_rows = TILE_ROWS
        rows_padded = int(pl.cdiv(rows, TILE_ROWS)) * TILE_ROWS
    n_padded = rows_padded * LANES
    grid = (rows_padded // tile_rows,)

    flat = x.reshape(-1)
    if n_padded != n:
        flat = jnp.pad(flat, (0, n_padded - n))
    x2d = flat.reshape(rows_padded, LANES)

    # 31-bit uniform integers, int32-safe so the in-kernel compare is a plain
    # signed compare against a literal threshold (no float math in the kernel).
    bits = jax.random.bits(key, (rows_padded, LANES), dtype=jnp.uint32)
    bits = (bits >> 1).astype(jnp.int32)

    threshold = int(round(p * (1 << 31)))  # compile-time literal
    scale = 1.0 / (1.0 - p)

    out2d = pl.pallas_call(
        functools.partial(dropout_kernel, threshold=threshold, scale=scale),
        out_shape=jax.ShapeDtypeStruct((rows_padded, LANES), orig_dtype),
        grid=grid,
        in_specs=[
            pl.BlockSpec((tile_rows, LANES), lambda i: (i, 0)),   # random bits
            pl.BlockSpec((tile_rows, LANES), lambda i: (i, 0)),   # x
        ],
        out_specs=pl.BlockSpec((tile_rows, LANES), lambda i: (i, 0)),
        compiler_params=pltpu.CompilerParams(
            dimension_semantics=("parallel",)),
    )(bits, x2d)

    return out2d.reshape(-1)[:n].reshape(orig_shape)


if __name__ == "__main__":
    key = jax.random.PRNGKey(0)
    kx, kd = jax.random.split(key)
    x = jax.random.normal(kx, (2, 4, 16, 16), dtype=jnp.float32)  # NCHW

    p = 0.1
    y = dropout_pallas(x, kd, p=p)
    y = jax.block_until_ready(y)

    # Sanity checks: shape/dtype preserved; surviving elements equal x / (1-p);
    # dropped fraction is roughly p.
    assert y.shape == x.shape and y.dtype == x.dtype
    kept_mask = y != 0.0
    scaled_ok = jnp.where(kept_mask, jnp.abs(y - x / (1.0 - p)) < 1e-5, True)
    assert bool(jnp.all(scaled_ok))
    drop_frac = 1.0 - float(jnp.mean(kept_mask.astype(jnp.float32)))
    assert 0.0 <= drop_frac <= 0.3  # loose check around p=0.1

    print("KERNEL_OK")
</pallas_src>

<mosaic_0001>
module attributes {stable_mosaic.version = 11 : i64} {
  func.func @dropout_kernel(%arg0: i32, %arg1: memref<4x512xi32, #tpu.memory_space<vmem>>, %arg2: memref<4x512xf32, #tpu.memory_space<vmem>>, %arg3: memref<4x512xf32, #tpu.memory_space<vmem>>) attributes {dimension_semantics = [#tpu.dimension_semantics<parallel>], iteration_bounds = array<i64: 1>, scalar_prefetch = 0 : i64, scratch_operands = 0 : i64, tpu.core_type = #tpu.core_type<tc>, window_params = [{transform_indices = @transform_0, window_bounds = array<i64: 4, 512>}, {transform_indices = @transform_1, window_bounds = array<i64: 4, 512>}, {transform_indices = @transform_2, window_bounds = array<i64: 4, 512>}]} {
    %c0 = arith.constant 0 : index
    %c0_0 = arith.constant 0 : index
    %0 = vector.load %arg1[%c0, %c0_0] : memref<4x512xi32, #tpu.memory_space<vmem>>, vector<4x512xi32>
    %c214748365_i32 = arith.constant 214748365 : i32
    %1 = vector.broadcast %c214748365_i32 : i32 to vector<4x512xi32>
    %2 = arith.cmpi sgt, %0, %1 : vector<4x512xi32>
    %c0_1 = arith.constant 0 : index
    %c0_2 = arith.constant 0 : index
    %3 = vector.load %arg2[%c0_1, %c0_2] : memref<4x512xf32, #tpu.memory_space<vmem>>, vector<4x512xf32>
    %cst = arith.constant 1.11111116 : f32
    %4 = vector.broadcast %cst : f32 to vector<4x512xf32>
    %5 = arith.mulf %3, %4 : vector<4x512xf32>
    %cst_3 = arith.constant 0.000000e+00 : f32
    %6 = vector.broadcast %cst_3 : f32 to vector<4x512xf32>
    %7 = arith.select %2, %5, %6 : vector<4x512xi1>, vector<4x512xf32>
    %c0_4 = arith.constant 0 : index
    %c0_5 = arith.constant 0 : index
    %8 = vector.load %arg3[%c0_4, %c0_5] : memref<4x512xf32, #tpu.memory_space<vmem>>, vector<4x512xf32>
    tpu.vector_store %arg3[%c0_4, %c0_5], %7 {strides = array<i32>} : memref<4x512xf32, #tpu.memory_space<vmem>>, vector<4x512xf32>,
    return
  }
  func.func @transform_0(%arg0: i32) -> (i32, i32) {
    %c0_i32 = arith.constant 0 : i32
    %c0_i32_0 = arith.constant 0 : i32
    return %arg0, %c0_i32 : i32, i32
  }
  func.func @transform_1(%arg0: i32) -> (i32, i32) {
    %c0_i32 = arith.constant 0 : i32
    %c0_i32_0 = arith.constant 0 : i32
    return %arg0, %c0_i32 : i32, i32
  }
  func.func @transform_2(%arg0: i32) -> (i32, i32) {
    %c0_i32 = arith.constant 0 : i32
    %c0_i32_0 = arith.constant 0 : i32
    return %arg0, %c0_i32 : i32, i32
  }
}

</mosaic_0001>

<llo_original>
// kernel: tpu_custom_call.1
$region0: #{tpu_custom_call.1}
  #allocation0 [shape = 'u32[]', space=smem, size = 0x4, offset = 0x4, fixed_abs, tag = 'smem constant byte address 0x4 - core index']
  #allocation1 [shape = 'u32[144,128]{1,0:T(1,128)}', space=vmem, size = 0x12000, scoped, tag = 'internal scratch']
  %s0 = inlined_call_operand.hbm [shape: s32[4,512], index: 0, kind: input, shape index: {}]
  %s1 = inlined_call_operand.hbm [shape: f32[4,512], index: 1, kind: input, shape index: {}]
  %s2 = inlined_call_operand.hbm [shape: f32[4,512], index: 2, kind: output, shape index: {}]
  %s3 = sld [smem:[#allocation0]]
  $region26: #{tpu_custom_call.1} parent=0
    _
  %s5 = ssub.s32 1, %s3
  %s6 = scalar_select 0, %s5, %s3
  $region1: #{tpu_custom_call.1} parent=0
    #allocation2 [shape = 'u8[8192]{0}', space=vmem, size = 0x2000, scoped, tag = 'input window, operand 0, single buffered']
    #allocation3 [shape = 's32[1]{0}', space=sflag, size = 0x4, scoped, tag = 'scoped memory for tpu_custom_call.1']
    #allocation4 [shape = 's32[1]{0}', space=sflag, size = 0x4, scoped, tag = 'scoped memory for tpu_custom_call.1']
    #allocation5 [shape = 'u8[8192]{0}', space=vmem, size = 0x2000, scoped, tag = 'input window, operand 1, single buffered']
    #allocation6 [shape = 's32[1]{0}', space=sflag, size = 0x4, scoped, tag = 'scoped memory for tpu_custom_call.1']
    #allocation7 [shape = 'u8[8192]{0}', space=vmem, size = 0x2000, scoped, tag = 'output window, operand 0, single buffered']
    %7 = vsyncpa [#allocation3], 0
    %8 = vsyncpa [#allocation6], 0
    %9 = vsyncpa [#allocation4], 0
    // Predicated region
    $region2: #{tpu_custom_call.1} parent=1 // pred_check
      _
    $region3: #{tpu_custom_call.1} parent=1 // pred_check_branch
      %11 = sbr.rel (0) target = $region5
    $region4: #{tpu_custom_call.1} parent=1 // pred_region
      %s13 = ssub.s32 256, 256
      %14 = vsyncadd [#allocation3], %s13
      %s16 = sshll.u32 [#allocation2], 4
      %s17 = int_to_ptr.vmem [resolvable:$true] %s16
      %19 = dma.hbm_to_vmem [thread:$0]  %s0, 256, %s17, [#allocation3]
    $region5: #{tpu_custom_call.1} parent=1 // pred_fallthru
      _
    // Predicated region
    $region6: #{tpu_custom_call.1} parent=1 // pred_check
      _
    $region7: #{tpu_custom_call.1} parent=1 // pred_check_branch
      %21 = sbr.rel (0) target = $region9
    $region8: #{tpu_custom_call.1} parent=1 // pred_region
      %s23 = ssub.s32 256, 256
      %24 = vsyncadd [#allocation6], %s23
      %s26 = sshll.u32 [#allocation5], 4
      %s27 = int_to_ptr.vmem [resolvable:$true] %s26
      %29 = dma.hbm_to_vmem [thread:$0]  %s1, 256, %s27, [#allocation6]
    $region9: #{tpu_custom_call.1} parent=1 // pred_fallthru
      _
    // Predicated region
    $region10: #{tpu_custom_call.1} parent=1 // pred_check
      _
    $region11: #{tpu_custom_call.1} parent=1 // pred_check_branch
      %31 = sbr.rel (0) target = $region13
    $region12: #{tpu_custom_call.1} parent=1 // pred_region
      %32 = dma.done [#allocation3], 256
    $region13: #{tpu_custom_call.1} parent=1 // pred_fallthru
      _
    // Predicated region
    $region14: #{tpu_custom_call.1} parent=1 // pred_check
      _
    $region15: #{tpu_custom_call.1} parent=1 // pred_check_branch
      %34 = sbr.rel (0) target = $region17
    $region16: #{tpu_custom_call.1} parent=1 // pred_region
      %35 = dma.done [#allocation6], 256
    $region17: #{tpu_custom_call.1} parent=1 // pred_fallthru
      _
    %v36 = vld [vmem:[#allocation2] sm:$0xff]
    %v37 = vld [vmem:[#allocation2 + $0x8] sm:$0xff]
    %vm38 = vcmp.gt.s32.totalorder %v36, 214748365
    %vm39 = vcmp.gt.s32.totalorder %v37, 214748365
    %v40 = vld [vmem:[#allocation5] sm:$0xff]
    %v41 = vld [vmem:[#allocation5 + $0x8] sm:$0xff]
    %v42 = vmul.f32 %v40, 1.1111112
    %v43 = vmul.f32 %v41, 1.1111112
    %v44 = vsel %vm38, %v42, 0.0
    %v45 = vsel %vm39, %v43, 0.0
    %46 = vst [vmem:[#allocation7] sm:$0xff] %v44
    %47 = vst [vmem:[#allocation7 + $0x8] sm:$0xff] %v45
    // Predicated region
    $region18: #{tpu_custom_call.1} parent=1 // pred_check
      _
    $region19: #{tpu_custom_call.1} parent=1 // pred_check_branch
      %49 = sbr.rel (0) target = $region21
    $region20: #{tpu_custom_call.1} parent=1 // pred_region
      %s51 = ssub.s32 256, 256
      %52 = vsyncadd [#allocation4], %s51
      %s54 = sshll.u32 [#allocation7], 4
      %s55 = int_to_ptr.vmem [resolvable:$true] %s54
      %57 = dma.vmem_to_hbm [thread:$0]  %s55, 256, %s2, [#allocation4]
    $region21: #{tpu_custom_call.1} parent=1 // pred_fallthru
      _
    // Predicated region
    $region22: #{tpu_custom_call.1} parent=1 // pred_check
      _
    $region23: #{tpu_custom_call.1} parent=1 // pred_check_branch
      %59 = sbr.rel (0) target = $region25
    $region24: #{tpu_custom_call.1} parent=1 // pred_region
      %60 = dma.done [#allocation4], 256
    $region25: #{tpu_custom_call.1} parent=1 // pred_fallthru
      _
    %61 = vsyncpa [#allocation3], 1
    %62 = vsyncpa [#allocation6], 1
    %63 = vsyncpa [#allocation4], 1

</llo_original>
